<compile_context>
chip_gen: v7x
topology: tpu7x:2x2x1
jax: 0.10.0
libtpu: 0.0.40
codegen_flags: <defaults>
</compile_context>

<pallas_src>
import functools

import jax
import jax.numpy as jnp
from jax.experimental import pallas as pl
from jax.experimental.pallas import tpu as pltpu


# ----------------------------------------------------------------------------- kernel


def _boundary_masks(c, l):
    """Column-index masks for the first / last sequence position, shape (c, l)."""
    col = jax.lax.broadcasted_iota(jnp.int32, (c, l), 1)
    return col == 0, col == l - 1


def _taps(v, first_mask, last_mask):
    """v: (C, L) -> (v[:, l-1], v[:, l], v[:, l+1]) with zero 'same' boundaries.

    Lane rotations go to the XLU (free slot vs. VPU/MXU); both shifts are
    non-negative (shift = L-1 is the circular equivalent of -1).
    """
    l = v.shape[1]
    zero = jnp.zeros_like(v)
    v_m1 = jnp.where(first_mask, zero, pltpu.roll(v, shift=1, axis=1))      # v[:, l-1]
    v_p1 = jnp.where(last_mask, zero, pltpu.roll(v, shift=l - 1, axis=1))   # v[:, l+1]
    return v_m1, v, v_p1


def _conv3(v, w_taps, first_mask, last_mask):
    """'same' k=3 conv as three accumulated MXU dots (no (3C, L) concatenate)."""
    v_m1, v0, v_p1 = _taps(v, first_mask, last_mask)
    return (jnp.dot(w_taps[0], v_m1, preferred_element_type=jnp.float32)
            + jnp.dot(w_taps[1], v0, preferred_element_type=jnp.float32)
            + jnp.dot(w_taps[2], v_p1, preferred_element_type=jnp.float32))


def _fused_block_kernel(x_ref, w1_ref, w2_ref, gamma_ref, beta_ref, b2_ref,
                        o_ref, *, negative_slope, eps):
    """conv1 -> batch-stats BN -> LeakyReLU -> conv2 -> residual, all in VMEM."""
    B, Cin, L = x_ref.shape
    Cout = w1_ref.shape[1]

    # Boundary masks built once per activation shape and reused everywhere.
    first1, last1 = _boundary_masks(Cin, L)     # for conv1's input taps
    first2, last2 = _boundary_masks(Cout, L)    # for conv2's input taps

    # Tiny weights loaded once, reused for every batch element.
    w1_taps = [w1_ref[k] for k in range(3)]     # each (Cout, Cin)
    w2_taps = [w2_ref[k] for k in range(3)]     # each (Cin, Cout)

    n = jnp.float32(B * L)

    # ---- pass 1: conv1 (bias-free; BN cancels it) + per-channel sums --------
    hs = []
    s = jnp.zeros((Cout, 1), jnp.float32)
    for b in range(B):
        h = _conv3(x_ref[b].astype(jnp.float32), w1_taps, first1, last1)  # (Cout, L)
        hs.append(h)
        s = s + jnp.sum(h, axis=1, keepdims=True)
    mean = s / n                                                          # (Cout, 1)

    # ---- pass 2: two-pass (centered) variance — numerically robust ----------
    ss = jnp.zeros((Cout, 1), jnp.float32)
    for b in range(B):
        d = hs[b] - mean
        ss = ss + jnp.sum(d * d, axis=1, keepdims=True)
    var = ss / n                                    # biased variance (BN training)
    scale = gamma_ref[...] * jax.lax.rsqrt(var + eps)                     # (Cout, 1)
    shift = beta_ref[...] - mean * scale                                  # (Cout, 1)

    # ---- pass 3: normalize -> LeakyReLU -> conv2 + bias -> residual ----------
    for b in range(B):
        hn = hs[b] * scale + shift
        a = jnp.where(hn > 0, hn, negative_slope * hn)                    # LeakyReLU
        y = _conv3(a, w2_taps, first2, last2) + b2_ref[...]               # (Cin, L)
        o_ref[b] = (x_ref[b] + y).astype(o_ref.dtype)


# ----------------------------------------------------------------------------- wrapper


@jax.jit
def encoder_conv_block(x, w1, b1, gamma, beta, w2, b2):
    """x: (B, Cin, L) float32 (PyTorch NCW layout). Returns (B, Cin, L)."""
    x = x.astype(jnp.float32)
    B, Cin, L = x.shape
    Cout = w1.shape[0]

    # b1 is accepted for API parity but intentionally unused: training-mode
    # BatchNorm's mean subtraction cancels a per-channel constant bias exactly.
    del b1

    # (C_out, C_in, 3) -> (3, C_out, C_in): one small matrix per conv tap.
    w1_taps = jnp.transpose(w1, (2, 0, 1)).astype(jnp.float32)
    w2_taps = jnp.transpose(w2, (2, 0, 1)).astype(jnp.float32)
    gamma_col = gamma.astype(jnp.float32)[:, None]   # (Cout, 1)
    beta_col = beta.astype(jnp.float32)[:, None]     # (Cout, 1)
    b2_col = b2.astype(jnp.float32)[:, None]         # (Cin, 1)

    kernel = functools.partial(_fused_block_kernel, negative_slope=0.01, eps=1e-5)

    # Single fused call: whole working set (~B*(Cin+Cout)*L*4 bytes) lives in
    # VMEM, so x is streamed from HBM exactly once and there is no intermediate
    # HBM traffic. No vmem_limit override: usage is far below the default scoped
    # limit on every generation (including v7x's 64 MiB physical VMEM).
    return pl.pallas_call(
        kernel,
        out_shape=jax.ShapeDtypeStruct((B, Cin, L), jnp.float32),
        grid=(1,),
        in_specs=[
            pl.BlockSpec((B, Cin, L), lambda i: (0, 0, 0)),
            pl.BlockSpec((3, Cout, Cin), lambda i: (0, 0, 0)),
            pl.BlockSpec((3, Cin, Cout), lambda i: (0, 0, 0)),
            pl.BlockSpec((Cout, 1), lambda i: (0, 0)),
            pl.BlockSpec((Cout, 1), lambda i: (0, 0)),
            pl.BlockSpec((Cin, 1), lambda i: (0, 0)),
        ],
        out_specs=pl.BlockSpec((B, Cin, L), lambda i: (0, 0, 0)),
        compiler_params=pltpu.CompilerParams(
            dimension_semantics=("arbitrary",),
        ),
    )(x, w1_taps, w2_taps, gamma_col, beta_col, b2_col)


# ----------------------------------------------------------------------------- reference


def _reference_forward(x, w1, b1, gamma, beta, w2, b2, eps=1e-5, negative_slope=0.01):
    """Independent pure-JAX (XLA) reference mirroring the PyTorch module."""
    def conv3_same(inp, w, b):
        _, _, l = inp.shape
        xp = jnp.pad(inp, ((0, 0), (0, 0), (1, 1)))
        out = b[None, :, None]
        for k in range(3):
            out = out + jnp.einsum("oi,bil->bol", w[:, :, k], xp[:, :, k:k + l])
        return out

    h = conv3_same(x, w1, b1)
    mean = jnp.mean(h, axis=(0, 2), keepdims=True)
    var = jnp.mean((h - mean) ** 2, axis=(0, 2), keepdims=True)
    hn = (h - mean) * jax.lax.rsqrt(var + eps)
    hn = hn * gamma[None, :, None] + beta[None, :, None]
    a = jnp.where(hn > 0, hn, negative_slope * hn)
    y = conv3_same(a, w2, b2)
    return x + y


# ----------------------------------------------------------------------------- main


if __name__ == "__main__":
    B, Cin, Cout, L = 2, 4, 8, 128   # L multiple of 128 -> lane-dense blocks

    key = jax.random.PRNGKey(0)
    k_x, k_w1, k_b1, k_g, k_be, k_w2, k_b2 = jax.random.split(key, 7)

    # Deterministic synthetic parameters (shapes match nn.Conv1d / nn.BatchNorm1d).
    x = jax.random.normal(k_x, (B, Cin, L), jnp.float32)
    w1 = jax.random.normal(k_w1, (Cout, Cin, 3), jnp.float32) * 0.2   # conv1 weight
    b1 = jax.random.normal(k_b1, (Cout,), jnp.float32) * 0.1          # conv1 bias
    gamma = 1.0 + 0.1 * jax.random.normal(k_g, (Cout,), jnp.float32)  # BN weight
    beta = 0.1 * jax.random.normal(k_be, (Cout,), jnp.float32)        # BN bias
    w2 = jax.random.normal(k_w2, (Cin, Cout, 3), jnp.float32) * 0.2   # conv2 weight
    b2 = jax.random.normal(k_b2, (Cin,), jnp.float32) * 0.1           # conv2 bias

    out = jax.block_until_ready(encoder_conv_block(x, w1, b1, gamma, beta, w2, b2))
    assert out.shape == (B, Cin, L)

    # Sanity check vs. an independent XLA reference (tolerance covers MXU passes).
    ref = _reference_forward(x, w1, b1, gamma, beta, w2, b2)
    max_err = float(jnp.max(jnp.abs(out - ref)))
    assert max_err < 5e-2, f"mismatch vs reference: max abs err {max_err}"

    print("KERNEL_OK")
</pallas_src>

<mosaic_0001>
module attributes {stable_mosaic.version = 11 : i64} {
  func.func @_fused_block_kernel(%arg0: i32, %arg1: memref<2x4x128xf32, #tpu.memory_space<vmem>>, %arg2: memref<3x8x4xf32, #tpu.memory_space<vmem>>, %arg3: memref<3x4x8xf32, #tpu.memory_space<vmem>>, %arg4: memref<8x1xf32, #tpu.memory_space<vmem>>, %arg5: memref<8x1xf32, #tpu.memory_space<vmem>>, %arg6: memref<4x1xf32, #tpu.memory_space<vmem>>, %arg7: memref<2x4x128xf32, #tpu.memory_space<vmem>>) attributes {dimension_semantics = [#tpu.dimension_semantics<arbitrary>], iteration_bounds = array<i64: 1>, scalar_prefetch = 0 : i64, scratch_operands = 0 : i64, tpu.core_type = #tpu.core_type<tc>, window_params = [{pipeline_mode = #tpu.pipeline_mode<synchronous>, transform_indices = @transform_0, window_bounds = array<i64: 2, 4, 128>}, {pipeline_mode = #tpu.pipeline_mode<synchronous>, transform_indices = @transform_1, window_bounds = array<i64: 3, 8, 4>}, {pipeline_mode = #tpu.pipeline_mode<synchronous>, transform_indices = @transform_2, window_bounds = array<i64: 3, 4, 8>}, {pipeline_mode = #tpu.pipeline_mode<synchronous>, transform_indices = @transform_3, window_bounds = array<i64: 8, 1>}, {pipeline_mode = #tpu.pipeline_mode<synchronous>, transform_indices = @transform_4, window_bounds = array<i64: 8, 1>}, {pipeline_mode = #tpu.pipeline_mode<synchronous>, transform_indices = @transform_5, window_bounds = array<i64: 4, 1>}, {pipeline_mode = #tpu.pipeline_mode<synchronous>, transform_indices = @transform_6, window_bounds = array<i64: 2, 4, 128>}]} {
    %0 = tpu.iota {dimensions = array<i32: 1>} : vector<4x128xi32>
    %c0_i32 = arith.constant 0 : i32
    %1 = vector.broadcast %c0_i32 : i32 to vector<4x128xi32>
    %2 = arith.cmpi eq, %0, %1 : vector<4x128xi32>
    %c127_i32 = arith.constant 127 : i32
    %3 = vector.broadcast %c127_i32 : i32 to vector<4x128xi32>
    %4 = arith.cmpi eq, %0, %3 : vector<4x128xi32>
    %5 = tpu.iota {dimensions = array<i32: 1>} : vector<8x128xi32>
    %c0_i32_0 = arith.constant 0 : i32
    %6 = vector.broadcast %c0_i32_0 : i32 to vector<8x128xi32>
    %7 = arith.cmpi eq, %5, %6 : vector<8x128xi32>
    %c127_i32_1 = arith.constant 127 : i32
    %8 = vector.broadcast %c127_i32_1 : i32 to vector<8x128xi32>
    %9 = arith.cmpi eq, %5, %8 : vector<8x128xi32>
    %c0 = arith.constant 0 : index
    %c0_2 = arith.constant 0 : index
    %c0_3 = arith.constant 0 : index
    %10 = vector.load %arg2[%c0, %c0_2, %c0_3] : memref<3x8x4xf32, #tpu.memory_space<vmem>>, vector<1x8x4xf32>
    %11 = vector.shape_cast %10 : vector<1x8x4xf32> to vector<8x4xf32>
    %c1 = arith.constant 1 : index
    %c0_4 = arith.constant 0 : index
    %c0_5 = arith.constant 0 : index
    %12 = vector.load %arg2[%c1, %c0_4, %c0_5] : memref<3x8x4xf32, #tpu.memory_space<vmem>>, vector<1x8x4xf32>
    %13 = vector.shape_cast %12 : vector<1x8x4xf32> to vector<8x4xf32>
    %c2 = arith.constant 2 : index
    %c0_6 = arith.constant 0 : index
    %c0_7 = arith.constant 0 : index
    %14 = vector.load %arg2[%c2, %c0_6, %c0_7] : memref<3x8x4xf32, #tpu.memory_space<vmem>>, vector<1x8x4xf32>
    %15 = vector.shape_cast %14 : vector<1x8x4xf32> to vector<8x4xf32>
    %c0_8 = arith.constant 0 : index
    %c0_9 = arith.constant 0 : index
    %c0_10 = arith.constant 0 : index
    %16 = vector.load %arg3[%c0_8, %c0_9, %c0_10] : memref<3x4x8xf32, #tpu.memory_space<vmem>>, vector<1x4x8xf32>
    %17 = vector.shape_cast %16 : vector<1x4x8xf32> to vector<4x8xf32>
    %c1_11 = arith.constant 1 : index
    %c0_12 = arith.constant 0 : index
    %c0_13 = arith.constant 0 : index
    %18 = vector.load %arg3[%c1_11, %c0_12, %c0_13] : memref<3x4x8xf32, #tpu.memory_space<vmem>>, vector<1x4x8xf32>
    %19 = vector.shape_cast %18 : vector<1x4x8xf32> to vector<4x8xf32>
    %c2_14 = arith.constant 2 : index
    %c0_15 = arith.constant 0 : index
    %c0_16 = arith.constant 0 : index
    %20 = vector.load %arg3[%c2_14, %c0_15, %c0_16] : memref<3x4x8xf32, #tpu.memory_space<vmem>>, vector<1x4x8xf32>
    %21 = vector.shape_cast %20 : vector<1x4x8xf32> to vector<4x8xf32>
    %cst = arith.constant 0.000000e+00 : f32
    %22 = vector.broadcast %cst : f32 to vector<8x1xf32>
    %c0_17 = arith.constant 0 : index
    %c0_18 = arith.constant 0 : index
    %c0_19 = arith.constant 0 : index
    %23 = vector.load %arg1[%c0_17, %c0_18, %c0_19] : memref<2x4x128xf32, #tpu.memory_space<vmem>>, vector<1x4x128xf32>
    %24 = vector.shape_cast %23 : vector<1x4x128xf32> to vector<4x128xf32>
    %cst_20 = arith.constant 0.000000e+00 : f32
    %25 = vector.broadcast %cst_20 : f32 to vector<4x128xf32>
    %c1_i32 = arith.constant 1 : i32
    %26 = tpu.dynamic_rotate %24 by %c1_i32 dim 1 : vector<4x128xf32>, i32 -> vector<4x128xf32>
    %27 = arith.select %2, %25, %26 : vector<4x128xi1>, vector<4x128xf32>
    %c127_i32_21 = arith.constant 127 : i32
    %28 = tpu.dynamic_rotate %24 by %c127_i32_21 dim 1 : vector<4x128xf32>, i32 -> vector<4x128xf32>
    %29 = arith.select %4, %25, %28 : vector<4x128xi1>, vector<4x128xf32>
    %cst_22 = arith.constant dense<0.000000e+00> : vector<8x128xf32>
    %30 = tpu.matmul %11, %27, %cst_22 {dimension_numbers = #tpu.dot_dimension_numbers<[1], [0], [0], [1], [0, 0, 1, 1], [], []>} : vector<8x4xf32>, vector<4x128xf32>, vector<8x128xf32> -> vector<8x128xf32>
    %cst_23 = arith.constant dense<0.000000e+00> : vector<8x128xf32>
    %31 = tpu.matmul %13, %24, %cst_23 {dimension_numbers = #tpu.dot_dimension_numbers<[1], [0], [0], [1], [0, 0, 1, 1], [], []>} : vector<8x4xf32>, vector<4x128xf32>, vector<8x128xf32> -> vector<8x128xf32>
    %32 = arith.addf %30, %31 : vector<8x128xf32>
    %cst_24 = arith.constant dense<0.000000e+00> : vector<8x128xf32>
    %33 = tpu.matmul %15, %29, %cst_24 {dimension_numbers = #tpu.dot_dimension_numbers<[1], [0], [0], [1], [0, 0, 1, 1], [], []>} : vector<8x4xf32>, vector<4x128xf32>, vector<8x128xf32> -> vector<8x128xf32>
    %34 = arith.addf %32, %33 : vector<8x128xf32>
    %cst_25 = arith.constant dense<0.000000e+00> : vector<8xf32>
    %35 = vector.multi_reduction <add>, %34, %cst_25 [1] : vector<8x128xf32> to vector<8xf32>
    %36 = vector.shape_cast %35 : vector<8xf32> to vector<8x1xf32>
    %37 = arith.addf %22, %36 : vector<8x1xf32>
    %c1_26 = arith.constant 1 : index
    %c0_27 = arith.constant 0 : index
    %c0_28 = arith.constant 0 : index
    %38 = vector.load %arg1[%c1_26, %c0_27, %c0_28] : memref<2x4x128xf32, #tpu.memory_space<vmem>>, vector<1x4x128xf32>
    %39 = vector.shape_cast %38 : vector<1x4x128xf32> to vector<4x128xf32>
    %cst_29 = arith.constant 0.000000e+00 : f32
    %40 = vector.broadcast %cst_29 : f32 to vector<4x128xf32>
    %c1_i32_30 = arith.constant 1 : i32
    %41 = tpu.dynamic_rotate %39 by %c1_i32_30 dim 1 : vector<4x128xf32>, i32 -> vector<4x128xf32>
    %42 = arith.select %2, %40, %41 : vector<4x128xi1>, vector<4x128xf32>
    %c127_i32_31 = arith.constant 127 : i32
    %43 = tpu.dynamic_rotate %39 by %c127_i32_31 dim 1 : vector<4x128xf32>, i32 -> vector<4x128xf32>
    %44 = arith.select %4, %40, %43 : vector<4x128xi1>, vector<4x128xf32>
    %cst_32 = arith.constant dense<0.000000e+00> : vector<8x128xf32>
    %45 = tpu.matmul %11, %42, %cst_32 {dimension_numbers = #tpu.dot_dimension_numbers<[1], [0], [0], [1], [0, 0, 1, 1], [], []>} : vector<8x4xf32>, vector<4x128xf32>, vector<8x128xf32> -> vector<8x128xf32>
    %cst_33 = arith.constant dense<0.000000e+00> : vector<8x128xf32>
    %46 = tpu.matmul %13, %39, %cst_33 {dimension_numbers = #tpu.dot_dimension_numbers<[1], [0], [0], [1], [0, 0, 1, 1], [], []>} : vector<8x4xf32>, vector<4x128xf32>, vector<8x128xf32> -> vector<8x128xf32>
    %47 = arith.addf %45, %46 : vector<8x128xf32>
    %cst_34 = arith.constant dense<0.000000e+00> : vector<8x128xf32>
    %48 = tpu.matmul %15, %44, %cst_34 {dimension_numbers = #tpu.dot_dimension_numbers<[1], [0], [0], [1], [0, 0, 1, 1], [], []>} : vector<8x4xf32>, vector<4x128xf32>, vector<8x128xf32> -> vector<8x128xf32>
    %49 = arith.addf %47, %48 : vector<8x128xf32>
    %cst_35 = arith.constant dense<0.000000e+00> : vector<8xf32>
    %50 = vector.multi_reduction <add>, %49, %cst_35 [1] : vector<8x128xf32> to vector<8xf32>
    %51 = vector.shape_cast %50 : vector<8xf32> to vector<8x1xf32>
    %52 = arith.addf %37, %51 : vector<8x1xf32>
    %cst_36 = arith.constant 2.560000e+02 : f32
    %53 = vector.broadcast %cst_36 : f32 to vector<8x1xf32>
    %54 = arith.divf %52, %53 : vector<8x1xf32>
    %cst_37 = arith.constant 0.000000e+00 : f32
    %55 = vector.broadcast %cst_37 : f32 to vector<8x1xf32>
    %56 = vector.broadcast %54 : vector<8x1xf32> to vector<8x128xf32>
    %57 = arith.subf %34, %56 : vector<8x128xf32>
    %58 = arith.mulf %57, %57 : vector<8x128xf32>
    %cst_38 = arith.constant dense<0.000000e+00> : vector<8xf32>
    %59 = vector.multi_reduction <add>, %58, %cst_38 [1] : vector<8x128xf32> to vector<8xf32>
    %60 = vector.shape_cast %59 : vector<8xf32> to vector<8x1xf32>
    %61 = arith.addf %55, %60 : vector<8x1xf32>
    %62 = vector.broadcast %54 : vector<8x1xf32> to vector<8x128xf32>
    %63 = arith.subf %49, %62 : vector<8x128xf32>
    %64 = arith.mulf %63, %63 : vector<8x128xf32>
    %cst_39 = arith.constant dense<0.000000e+00> : vector<8xf32>
    %65 = vector.multi_reduction <add>, %64, %cst_39 [1] : vector<8x128xf32> to vector<8xf32>
    %66 = vector.shape_cast %65 : vector<8xf32> to vector<8x1xf32>
    %67 = arith.addf %61, %66 : vector<8x1xf32>
    %cst_40 = arith.constant 2.560000e+02 : f32
    %68 = vector.broadcast %cst_40 : f32 to vector<8x1xf32>
    %69 = arith.divf %67, %68 : vector<8x1xf32>
    %c0_41 = arith.constant 0 : index
    %c0_42 = arith.constant 0 : index
    %70 = vector.load %arg4[%c0_41, %c0_42] : memref<8x1xf32, #tpu.memory_space<vmem>>, vector<8x1xf32>
    %cst_43 = arith.constant 9.99999974E-6 : f32
    %71 = vector.broadcast %cst_43 : f32 to vector<8x1xf32>
    %72 = arith.addf %69, %71 : vector<8x1xf32>
    %73 = math.rsqrt %72 : vector<8x1xf32>
    %74 = arith.mulf %70, %73 : vector<8x1xf32>
    %c0_44 = arith.constant 0 : index
    %c0_45 = arith.constant 0 : index
    %75 = vector.load %arg5[%c0_44, %c0_45] : memref<8x1xf32, #tpu.memory_space<vmem>>, vector<8x1xf32>
    %76 = arith.mulf %54, %74 : vector<8x1xf32>
    %77 = arith.subf %75, %76 : vector<8x1xf32>
    %78 = vector.broadcast %74 : vector<8x1xf32> to vector<8x128xf32>
    %79 = arith.mulf %34, %78 : vector<8x128xf32>
    %80 = vector.broadcast %77 : vector<8x1xf32> to vector<8x128xf32>
    %81 = arith.addf %79, %80 : vector<8x128xf32>
    %cst_46 = arith.constant 0.000000e+00 : f32
    %82 = vector.broadcast %cst_46 : f32 to vector<8x128xf32>
    %83 = arith.cmpf ogt, %81, %82 : vector<8x128xf32>
    %cst_47 = arith.constant 0.00999999977 : f32
    %84 = vector.broadcast %cst_47 : f32 to vector<8x128xf32>
    %85 = arith.mulf %84, %81 : vector<8x128xf32>
    %86 = arith.select %83, %81, %85 : vector<8x128xi1>, vector<8x128xf32>
    %cst_48 = arith.constant 0.000000e+00 : f32
    %87 = vector.broadcast %cst_48 : f32 to vector<8x128xf32>
    %c1_i32_49 = arith.constant 1 : i32
    %88 = tpu.dynamic_rotate %86 by %c1_i32_49 dim 1 : vector<8x128xf32>, i32 -> vector<8x128xf32>
    %89 = arith.select %7, %87, %88 : vector<8x128xi1>, vector<8x128xf32>
    %c127_i32_50 = arith.constant 127 : i32
    %90 = tpu.dynamic_rotate %86 by %c127_i32_50 dim 1 : vector<8x128xf32>, i32 -> vector<8x128xf32>
    %91 = arith.select %9, %87, %90 : vector<8x128xi1>, vector<8x128xf32>
    %cst_51 = arith.constant dense<0.000000e+00> : vector<4x128xf32>
    %92 = tpu.matmul %17, %89, %cst_51 {dimension_numbers = #tpu.dot_dimension_numbers<[1], [0], [0], [1], [0, 0, 1, 1], [], []>} : vector<4x8xf32>, vector<8x128xf32>, vector<4x128xf32> -> vector<4x128xf32>
    %cst_52 = arith.constant dense<0.000000e+00> : vector<4x128xf32>
    %93 = tpu.matmul %19, %86, %cst_52 {dimension_numbers = #tpu.dot_dimension_numbers<[1], [0], [0], [1], [0, 0, 1, 1], [], []>} : vector<4x8xf32>, vector<8x128xf32>, vector<4x128xf32> -> vector<4x128xf32>
    %94 = arith.addf %92, %93 : vector<4x128xf32>
    %cst_53 = arith.constant dense<0.000000e+00> : vector<4x128xf32>
    %95 = tpu.matmul %21, %91, %cst_53 {dimension_numbers = #tpu.dot_dimension_numbers<[1], [0], [0], [1], [0, 0, 1, 1], [], []>} : vector<4x8xf32>, vector<8x128xf32>, vector<4x128xf32> -> vector<4x128xf32>
    %96 = arith.addf %94, %95 : vector<4x128xf32>
    %c0_54 = arith.constant 0 : index
    %c0_55 = arith.constant 0 : index
    %97 = vector.load %arg6[%c0_54, %c0_55] : memref<4x1xf32, #tpu.memory_space<vmem>>, vector<4x1xf32>
    %98 = vector.broadcast %97 : vector<4x1xf32> to vector<4x128xf32>
    %99 = arith.addf %96, %98 : vector<4x128xf32>
    %c0_56 = arith.constant 0 : index
    %c0_57 = arith.constant 0 : index
    %c0_58 = arith.constant 0 : index
    %100 = vector.load %arg1[%c0_56, %c0_57, %c0_58] : memref<2x4x128xf32, #tpu.memory_space<vmem>>, vector<1x4x128xf32>
    %101 = vector.shape_cast %100 : vector<1x4x128xf32> to vector<4x128xf32>
    %102 = arith.addf %101, %99 : vector<4x128xf32>
    %c0_59 = arith.constant 0 : index
    %c0_60 = arith.constant 0 : index
    %c0_61 = arith.constant 0 : index
    %103 = vector.load %arg7[%c0_59, %c0_60, %c0_61] : memref<2x4x128xf32, #tpu.memory_space<vmem>>, vector<1x4x128xf32>
    %104 = vector.shape_cast %103 : vector<1x4x128xf32> to vector<4x128xf32>
    %105 = vector.shape_cast %102 : vector<4x128xf32> to vector<1x4x128xf32>
    tpu.vector_store %arg7[%c0_59, %c0_60, %c0_61], %105 {strides = array<i32>} : memref<2x4x128xf32, #tpu.memory_space<vmem>>, vector<1x4x128xf32>,
    %106 = vector.broadcast %74 : vector<8x1xf32> to vector<8x128xf32>
    %107 = arith.mulf %49, %106 : vector<8x128xf32>
    %108 = vector.broadcast %77 : vector<8x1xf32> to vector<8x128xf32>
    %109 = arith.addf %107, %108 : vector<8x128xf32>
    %cst_62 = arith.constant 0.000000e+00 : f32
    %110 = vector.broadcast %cst_62 : f32 to vector<8x128xf32>
    %111 = arith.cmpf ogt, %109, %110 : vector<8x128xf32>
    %cst_63 = arith.constant 0.00999999977 : f32
    %112 = vector.broadcast %cst_63 : f32 to vector<8x128xf32>
    %113 = arith.mulf %112, %109 : vector<8x128xf32>
    %114 = arith.select %111, %109, %113 : vector<8x128xi1>, vector<8x128xf32>
    %cst_64 = arith.constant 0.000000e+00 : f32
    %115 = vector.broadcast %cst_64 : f32 to vector<8x128xf32>
    %c1_i32_65 = arith.constant 1 : i32
    %116 = tpu.dynamic_rotate %114 by %c1_i32_65 dim 1 : vector<8x128xf32>, i32 -> vector<8x128xf32>
    %117 = arith.select %7, %115, %116 : vector<8x128xi1>, vector<8x128xf32>
    %c127_i32_66 = arith.constant 127 : i32
    %118 = tpu.dynamic_rotate %114 by %c127_i32_66 dim 1 : vector<8x128xf32>, i32 -> vector<8x128xf32>
    %119 = arith.select %9, %115, %118 : vector<8x128xi1>, vector<8x128xf32>
    %cst_67 = arith.constant dense<0.000000e+00> : vector<4x128xf32>
    %120 = tpu.matmul %17, %117, %cst_67 {dimension_numbers = #tpu.dot_dimension_numbers<[1], [0], [0], [1], [0, 0, 1, 1], [], []>} : vector<4x8xf32>, vector<8x128xf32>, vector<4x128xf32> -> vector<4x128xf32>
    %cst_68 = arith.constant dense<0.000000e+00> : vector<4x128xf32>
    %121 = tpu.matmul %19, %114, %cst_68 {dimension_numbers = #tpu.dot_dimension_numbers<[1], [0], [0], [1], [0, 0, 1, 1], [], []>} : vector<4x8xf32>, vector<8x128xf32>, vector<4x128xf32> -> vector<4x128xf32>
    %122 = arith.addf %120, %121 : vector<4x128xf32>
    %cst_69 = arith.constant dense<0.000000e+00> : vector<4x128xf32>
    %123 = tpu.matmul %21, %119, %cst_69 {dimension_numbers = #tpu.dot_dimension_numbers<[1], [0], [0], [1], [0, 0, 1, 1], [], []>} : vector<4x8xf32>, vector<8x128xf32>, vector<4x128xf32> -> vector<4x128xf32>
    %124 = arith.addf %122, %123 : vector<4x128xf32>
    %c0_70 = arith.constant 0 : index
    %c0_71 = arith.constant 0 : index
    %125 = vector.load %arg6[%c0_70, %c0_71] : memref<4x1xf32, #tpu.memory_space<vmem>>, vector<4x1xf32>
    %126 = vector.broadcast %125 : vector<4x1xf32> to vector<4x128xf32>
    %127 = arith.addf %124, %126 : vector<4x128xf32>
    %c1_72 = arith.constant 1 : index
    %c0_73 = arith.constant 0 : index
    %c0_74 = arith.constant 0 : index
    %128 = vector.load %arg1[%c1_72, %c0_73, %c0_74] : memref<2x4x128xf32, #tpu.memory_space<vmem>>, vector<1x4x128xf32>
    %129 = vector.shape_cast %128 : vector<1x4x128xf32> to vector<4x128xf32>
    %130 = arith.addf %129, %127 : vector<4x128xf32>
    %c1_75 = arith.constant 1 : index
    %c0_76 = arith.constant 0 : index
    %c0_77 = arith.constant 0 : index
    %131 = vector.load %arg7[%c1_75, %c0_76, %c0_77] : memref<2x4x128xf32, #tpu.memory_space<vmem>>, vector<1x4x128xf32>
    %132 = vector.shape_cast %131 : vector<1x4x128xf32> to vector<4x128xf32>
    %133 = vector.shape_cast %130 : vector<4x128xf32> to vector<1x4x128xf32>
    tpu.vector_store %arg7[%c1_75, %c0_76, %c0_77], %133 {strides = array<i32>} : memref<2x4x128xf32, #tpu.memory_space<vmem>>, vector<1x4x128xf32>,
    return
  }
  func.func @transform_0(%arg0: i32) -> (i32, i32, i32) {
    %c0_i32 = arith.constant 0 : i32
    %c0_i32_0 = arith.constant 0 : i32
    %c0_i32_1 = arith.constant 0 : i32
    %c0_i32_2 = arith.constant 0 : i32
    return %c0_i32, %c0_i32_0, %c0_i32_1 : i32, i32, i32
  }
  func.func @transform_1(%arg0: i32) -> (i32, i32, i32) {
    %c0_i32 = arith.constant 0 : i32
    %c0_i32_0 = arith.constant 0 : i32
    %c0_i32_1 = arith.constant 0 : i32
    %c0_i32_2 = arith.constant 0 : i32
    return %c0_i32, %c0_i32_0, %c0_i32_1 : i32, i32, i32
  }
  func.func @transform_2(%arg0: i32) -> (i32, i32, i32) {
    %c0_i32 = arith.constant 0 : i32
    %c0_i32_0 = arith.constant 0 : i32
    %c0_i32_1 = arith.constant 0 : i32
    %c0_i32_2 = arith.constant 0 : i32
    return %c0_i32, %c0_i32_0, %c0_i32_1 : i32, i32, i32
  }
  func.func @transform_3(%arg0: i32) -> (i32, i32) {
    %c0_i32 = arith.constant 0 : i32
    %c0_i32_0 = arith.constant 0 : i32
    %c0_i32_1 = arith.constant 0 : i32
    return %c0_i32, %c0_i32_0 : i32, i32
  }
  func.func @transform_4(%arg0: i32) -> (i32, i32) {
    %c0_i32 = arith.constant 0 : i32
    %c0_i32_0 = arith.constant 0 : i32
    %c0_i32_1 = arith.constant 0 : i32
    return %c0_i32, %c0_i32_0 : i32, i32
  }
  func.func @transform_5(%arg0: i32) -> (i32, i32) {
    %c0_i32 = arith.constant 0 : i32
    %c0_i32_0 = arith.constant 0 : i32
    %c0_i32_1 = arith.constant 0 : i32
    return %c0_i32, %c0_i32_0 : i32, i32
  }
  func.func @transform_6(%arg0: i32) -> (i32, i32, i32) {
    %c0_i32 = arith.constant 0 : i32
    %c0_i32_0 = arith.constant 0 : i32
    %c0_i32_1 = arith.constant 0 : i32
    %c0_i32_2 = arith.constant 0 : i32
    return %c0_i32, %c0_i32_0, %c0_i32_1 : i32, i32, i32
  }
}

</mosaic_0001>

<llo_original>
// kernel: encoder_conv_block.1
$region0: #{encoder_conv_block.1}
  #allocation0 [shape = 'u32[]', space=smem, size = 0x4, offset = 0x4, fixed_abs, tag = 'smem constant byte address 0x4 - core index']
  #allocation1 [shape = 'u32[144,128]{1,0:T(1,128)}', space=vmem, size = 0x12000, scoped, tag = 'internal scratch']
  %s0 = inlined_call_operand.vmem [shape: f32[2,4,128], index: 0, kind: input, shape index: {}]
  %s1 = inlined_call_operand.vmem [shape: f32[3,8,4], index: 1, kind: input, shape index: {}]
  %s2 = inlined_call_operand.vmem [shape: f32[3,4,8], index: 2, kind: input, shape index: {}]
  %s3 = inlined_call_operand.vmem [shape: f32[8,1], index: 3, kind: input, shape index: {}]
  %s4 = inlined_call_operand.vmem [shape: f32[8,1], index: 4, kind: input, shape index: {}]
  %s5 = inlined_call_operand.vmem [shape: f32[4,1], index: 5, kind: input, shape index: {}]
  %s6 = inlined_call_operand.hbm [shape: f32[2,4,128], index: 6, kind: output, shape index: {}]
  %s7 = sld [smem:[#allocation0]]
  $region34: #{encoder_conv_block.1} parent=0
    _
  %s9 = ssub.s32 1, %s7
  %s10 = scalar_select 0, %s9, %s7
  $region1: #{encoder_conv_block.1} parent=0
    #allocation2 [shape = 'u8[4096]{0}', space=vmem, size = 0x1000, scoped, tag = 'output window, operand 0, single buffered']
    #allocation3 [shape = 's32[1]{0}', space=sflag, size = 0x4, scoped, tag = 'scoped memory for encoder_conv_block.1']
    %11 = vsyncpa [#allocation3], 0
    // Predicated region
    $region2: #{encoder_conv_block.1} parent=1 // pred_check
      _
    $region3: #{encoder_conv_block.1} parent=1 // pred_check_branch
      %13 = sbr.rel (0) target = $region5
    $region4: #{encoder_conv_block.1} parent=1 // pred_region
      _
    $region5: #{encoder_conv_block.1} parent=1 // pred_fallthru
      _
    // Predicated region
    $region6: #{encoder_conv_block.1} parent=1 // pred_check
      _
    $region7: #{encoder_conv_block.1} parent=1 // pred_check_branch
      %15 = sbr.rel (0) target = $region9
    $region8: #{encoder_conv_block.1} parent=1 // pred_region
      _
    $region9: #{encoder_conv_block.1} parent=1 // pred_fallthru
      _
    // Predicated region
    $region10: #{encoder_conv_block.1} parent=1 // pred_check
      _
    $region11: #{encoder_conv_block.1} parent=1 // pred_check_branch
      %17 = sbr.rel (0) target = $region13
    $region12: #{encoder_conv_block.1} parent=1 // pred_region
      _
    $region13: #{encoder_conv_block.1} parent=1 // pred_fallthru
      _
    // Predicated region
    $region14: #{encoder_conv_block.1} parent=1 // pred_check
      _
    $region15: #{encoder_conv_block.1} parent=1 // pred_check_branch
      %19 = sbr.rel (0) target = $region17
    $region16: #{encoder_conv_block.1} parent=1 // pred_region
      _
    $region17: #{encoder_conv_block.1} parent=1 // pred_fallthru
      _
    // Predicated region
    $region18: #{encoder_conv_block.1} parent=1 // pred_check
      _
    $region19: #{encoder_conv_block.1} parent=1 // pred_check_branch
      %21 = sbr.rel (0) target = $region21
    $region20: #{encoder_conv_block.1} parent=1 // pred_region
      _
    $region21: #{encoder_conv_block.1} parent=1 // pred_fallthru
      _
    // Predicated region
    $region22: #{encoder_conv_block.1} parent=1 // pred_check
      _
    $region23: #{encoder_conv_block.1} parent=1 // pred_check_branch
      %23 = sbr.rel (0) target = $region25
    $region24: #{encoder_conv_block.1} parent=1 // pred_region
      _
    $region25: #{encoder_conv_block.1} parent=1 // pred_fallthru
      _
    %v24 = vlaneseq
    %v25 = vand.u32 %v24, 127
    %vm26 = vcmp.eq.s32.totalorder %v25, 0
    %vm27 = vcmp.eq.s32.totalorder %v25, 127
    %v28 = vld [vmem:[%s1] sm:$0xff]
    %s29 = scalar_lea.vmem %s1, 8
    %v30 = vld [vmem:[%s29] sm:$0xff]
    %s31 = scalar_lea.vmem %s1, 16
    %v32 = vld [vmem:[%s31] sm:$0xff]
    %v33 = vld [vmem:[%s2] sm:$0xf]
    %s34 = scalar_lea.vmem %s2, 4
    %v35 = vld [vmem:[%s34] sm:$0xf]
    %s36 = scalar_lea.vmem %s2, 8
    %v37 = vld [vmem:[%s36] sm:$0xf]
    %v38 = vld [vmem:[%s0] sm:$0xf]
    %39 = vrot.lane.b32.xlu0 %v38, 1
    %v40 = vpop.permute.xlu0 %39
    %v41 = vsel %vm26, 0.0, %v40
    %42 = vrot.lane.b32.xlu0 %v38, 127
    %v43 = vpop.permute.xlu0 %42
    %v44 = vsel %vm27, 0.0, %v43
    %vm45 = vcmask 31744
    %v47 = vsel %vm45, %v30, 0
    %vm49 = vcmask 1043456
    %v51 = vsel %vm49, %v38, 0
    %53 = vmatprep.subr.mxu0 0.0
    %54 = vmatpush1.msra.mxu0 %v51
    %55 = vmatprep.subr.mxu0 0.0
    %56 = vmatpush1.msra.mxu0 0.0
    %57 = vmatprep.subr.mxu0 0.0
    %58 = vmatpush1.msra.mxu0 0.0
    %59 = vmatprep.subr.mxu0 0.0
    %60 = vmatpush1.msra.mxu0 0.0
    %61 = vmatprep.subr.mxu0 0.0
    %62 = vmatpush1.msra.mxu0 0.0
    %63 = vmatprep.subr.mxu0 0.0
    %64 = vmatpush1.msra.mxu0 0.0
    %65 = vmatprep.subr.mxu0 0.0
    %66 = vmatpush1.msra.mxu0 0.0
    %67 = vmatprep.subr.mxu0 0.0
    %68 = vmatpush1.msra.mxu0 0.0
    %69 = vmatprep.subr.mxu0 0.0
    %70 = vmatpush1.msra.mxu0 0.0
    %71 = vmatprep.subr.mxu0 0.0
    %72 = vmatpush1.msra.mxu0 0.0
    %73 = vmatprep.subr.mxu0 0.0
    %74 = vmatpush1.msra.mxu0 0.0
    %75 = vmatprep.subr.mxu0 0.0
    %76 = vmatpush1.msra.mxu0 0.0
    %77 = vmatprep.subr.mxu0 0.0
    %78 = vmatpush1.msra.mxu0 0.0
    %79 = vmatprep.subr.mxu0 0.0
    %80 = vmatpush1.msra.mxu0 0.0
    %81 = vmatprep.subr.mxu0 0.0
    %82 = vmatpush1.msra.mxu0 0.0
    %83 = vmatprep.subr.mxu0 0.0
    %84 = vmatpush1.msra.mxu0 0.0
    %85 = vmatprep.subr.mxu0 0.0
    %86 = vmatpush1.msra.mxu0 0.0
    %87 = vmatprep.subr.mxu0 0.0
    %88 = vmatpush1.msra.mxu0 0.0
    %89 = vmatprep.subr.mxu0 0.0
    %90 = vmatpush1.msra.mxu0 0.0
    %91 = vmatprep.subr.mxu0 0.0
    %92 = vmatpush1.msra.mxu0 0.0
    %93 = vmatprep.subr.mxu0 0.0
    %94 = vmatpush1.msra.mxu0 0.0
    %95 = vmatprep.subr.mxu0 0.0
    %96 = vmatpush1.msra.mxu0 0.0
    %97 = vmatprep.subr.mxu0 0.0
    %98 = vmatpush1.msra.mxu0 0.0
    %99 = vmatprep.subr.mxu0 0.0
    %100 = vmatpush1.msra.mxu0 0.0
    %101 = vmatprep.subr.mxu0 0.0
    %102 = vmatpush1.msra.mxu0 0.0
    %103 = vmatprep.subr.mxu0 0.0
    %104 = vmatpush1.msra.mxu0 0.0
    %105 = vmatprep.subr.mxu0 0.0
    %106 = vmatpush1.msra.mxu0 0.0
    %107 = vmatprep.subr.mxu0 0.0
    %108 = vmatpush1.msra.mxu0 0.0
    %109 = vmatprep.subr.mxu0 0.0
    %110 = vmatpush1.msra.mxu0 0.0
    %111 = vmatprep.subr.mxu0 0.0
    %112 = vmatpush1.msra.mxu0 0.0
    %113 = vmatprep.subr.mxu0 0.0
    %114 = vmatpush1.msra.mxu0 0.0
    %115 = vmatprep.subr.mxu0 0.0
    %116 = vmatpush1.msra.mxu0 0.0
    %117 = vmatprep.mubr.f32.mxu0 0.0
    %118 = vmatmul.mubr.f32.gmra.mrb[0].mxu0 %v47
    %v119 = vpop.f32.mrb[0].mxu0
    %v120 = vadd.f32 0.0, %v119
    %v121 = vpop.f32.mrb[0].mxu0
    %122 = vdwg.mxu0
    %v124 = vsel %vm45, %v28, 0
    %v127 = vsel %vm49, %v41, 0
    %129 = vmatprep.subr.mxu0 0.0
    %130 = vmatpush1.msra.mxu0 %v127
    %131 = vmatprep.subr.mxu0 0.0
    %132 = vmatpush1.msra.mxu0 0.0
    %133 = vmatprep.subr.mxu0 0.0
    %134 = vmatpush1.msra.mxu0 0.0
    %135 = vmatprep.subr.mxu0 0.0
    %136 = vmatpush1.msra.mxu0 0.0
    %137 = vmatprep.subr.mxu0 0.0
    %138 = vmatpush1.msra.mxu0 0.0
    %139 = vmatprep.subr.mxu0 0.0
    %140 = vmatpush1.msra.mxu0 0.0
    %141 = vmatprep.subr.mxu0 0.0
    %142 = vmatpush1.msra.mxu0 0.0
    %143 = vmatprep.subr.mxu0 0.0
    %144 = vmatpush1.msra.mxu0 0.0
    %145 = vmatprep.subr.mxu0 0.0
    %146 = vmatpush1.msra.mxu0 0.0
    %147 = vmatprep.subr.mxu0 0.0
    %148 = vmatpush1.msra.mxu0 0.0
    %149 = vmatprep.subr.mxu0 0.0
    %150 = vmatpush1.msra.mxu0 0.0
    %151 = vmatprep.subr.mxu0 0.0
    %152 = vmatpush1.msra.mxu0 0.0
    %153 = vmatprep.subr.mxu0 0.0
    %154 = vmatpush1.msra.mxu0 0.0
    %155 = vmatprep.subr.mxu0 0.0
    %156 = vmatpush1.msra.mxu0 0.0
    %157 = vmatprep.subr.mxu0 0.0
    %158 = vmatpush1.msra.mxu0 0.0
    %159 = vmatprep.subr.mxu0 0.0
    %160 = vmatpush1.msra.mxu0 0.0
    %161 = vmatprep.subr.mxu0 0.0
    %162 = vmatpush1.msra.mxu0 0.0
    %163 = vmatprep.subr.mxu0 0.0
    %164 = vmatpush1.msra.mxu0 0.0
    %165 = vmatprep.subr.mxu0 0.0
    %166 = vmatpush1.msra.mxu0 0.0
    %167 = vmatprep.subr.mxu0 0.0
    %168 = vmatpush1.msra.mxu0 0.0
    %169 = vmatprep.subr.mxu0 0.0
    %170 = vmatpush1.msra.mxu0 0.0
    %171 = vmatprep.subr.mxu0 0.0
    %172 = vmatpush1.msra.mxu0 0.0
    %173 = vmatprep.subr.mxu0 0.0
    %174 = vmatpush1.msra.mxu0 0.0
    %175 = vmatprep.subr.mxu0 0.0
    %176 = vmatpush1.msra.mxu0 0.0
    %177 = vmatprep.subr.mxu0 0.0
    %178 = vmatpush1.msra.mxu0 0.0
    %179 = vmatprep.subr.mxu0 0.0
    %180 = vmatpush1.msra.mxu0 0.0
    %181 = vmatprep.subr.mxu0 0.0
    %182 = vmatpush1.msra.mxu0 0.0
    %183 = vmatprep.subr.mxu0 0.0
    %184 = vmatpush1.msra.mxu0 0.0
    %185 = vmatprep.subr.mxu0 0.0
    %186 = vmatpush1.msra.mxu0 0.0
    %187 = vmatprep.subr.mxu0 0.0
    %188 = vmatpush1.msra.mxu0 0.0
    %189 = vmatprep.subr.mxu0 0.0
    %190 = vmatpush1.msra.mxu0 0.0
    %191 = vmatprep.subr.mxu0 0.0
    %192 = vmatpush1.msra.mxu0 0.0
    %193 = vmatprep.mubr.f32.mxu0 0.0
    %194 = vmatmul.mubr.f32.gmra.mrb[0].mxu0 %v124
    %v195 = vpop.f32.mrb[0].mxu0
    %v196 = vadd.f32 %v120, %v195
    %v197 = vpop.f32.mrb[0].mxu0
    %198 = vdwg.mxu0
    %v200 = vsel %vm45, %v32, 0
    %v203 = vsel %vm49, %v44, 0
    %205 = vmatprep.subr.mxu0 0.0
    %206 = vmatpush1.msra.mxu0 %v203
    %207 = vmatprep.subr.mxu0 0.0
    %208 = vmatpush1.msra.mxu0 0.0
    %209 = vmatprep.subr.mxu0 0.0
    %210 = vmatpush1.msra.mxu0 0.0
    %211 = vmatprep.subr.mxu0 0.0
    %212 = vmatpush1.msra.mxu0 0.0
    %213 = vmatprep.subr.mxu0 0.0
    %214 = vmatpush1.msra.mxu0 0.0
    %215 = vmatprep.subr.mxu0 0.0
    %216 = vmatpush1.msra.mxu0 0.0
    %217 = vmatprep.subr.mxu0 0.0
    %218 = vmatpush1.msra.mxu0 0.0
    %219 = vmatprep.subr.mxu0 0.0
    %220 = vmatpush1.msra.mxu0 0.0
    %221 = vmatprep.subr.mxu0 0.0
    %222 = vmatpush1.msra.mxu0 0.0
    %223 = vmatprep.subr.mxu0 0.0
    %224 = vmatpush1.msra.mxu0 0.0
    %225 = vmatprep.subr.mxu0 0.0
    %226 = vmatpush1.msra.mxu0 0.0
    %227 = vmatprep.subr.mxu0 0.0
    %228 = vmatpush1.msra.mxu0 0.0
    %229 = vmatprep.subr.mxu0 0.0
    %230 = vmatpush1.msra.mxu0 0.0
    %231 = vmatprep.subr.mxu0 0.0
    %232 = vmatpush1.msra.mxu0 0.0
    %233 = vmatprep.subr.mxu0 0.0
    %234 = vmatpush1.msra.mxu0 0.0
    %235 = vmatprep.subr.mxu0 0.0
    %236 = vmatpush1.msra.mxu0 0.0
    %237 = vmatprep.subr.mxu0 0.0
    %238 = vmatpush1.msra.mxu0 0.0
    %239 = vmatprep.subr.mxu0 0.0
    %240 = vmatpush1.msra.mxu0 0.0
    %241 = vmatprep.subr.mxu0 0.0
    %242 = vmatpush1.msra.mxu0 0.0
    %243 = vmatprep.subr.mxu0 0.0
    %244 = vmatpush1.msra.mxu0 0.0
    %245 = vmatprep.subr.mxu0 0.0
    %246 = vmatpush1.msra.mxu0 0.0
    %247 = vmatprep.subr.mxu0 0.0
    %248 = vmatpush1.msra.mxu0 0.0
    %249 = vmatprep.subr.mxu0 0.0
    %250 = vmatpush1.msra.mxu0 0.0
    %251 = vmatprep.subr.mxu0 0.0
    %252 = vmatpush1.msra.mxu0 0.0
    %253 = vmatprep.subr.mxu0 0.0
    %254 = vmatpush1.msra.mxu0 0.0
    %255 = vmatprep.subr.mxu0 0.0
    %256 = vmatpush1.msra.mxu0 0.0
    %257 = vmatprep.subr.mxu0 0.0
    %258 = vmatpush1.msra.mxu0 0.0
    %259 = vmatprep.subr.mxu0 0.0
    %260 = vmatpush1.msra.mxu0 0.0
    %261 = vmatprep.subr.mxu0 0.0
    %262 = vmatpush1.msra.mxu0 0.0
    %263 = vmatprep.subr.mxu0 0.0
    %264 = vmatpush1.msra.mxu0 0.0
    %265 = vmatprep.subr.mxu0 0.0
    %266 = vmatpush1.msra.mxu0 0.0
    %267 = vmatprep.subr.mxu0 0.0
    %268 = vmatpush1.msra.mxu0 0.0
    %269 = vmatprep.mubr.f32.mxu0 0.0
    %270 = vmatmul.mubr.f32.gmra.mrb[0].mxu0 %v200
    %v271 = vpop.f32.mrb[0].mxu0
    %v272 = vadd.f32 0.0, %v271
    %v273 = vpop.f32.mrb[0].mxu0
    %274 = vdwg.mxu0
    %v275 = vadd.f32 %v196, %v272
    %276 = vadd.xlane.f32.xlu0 %v275
    %v277 = vpop.xlane.xlu0 %276
    %v278 = vadd.f32 %v277, 0.0
    %s279 = scalar_lea.vmem %s0, 4
    %v280 = vld [vmem:[%s279] sm:$0xf]
    %281 = vrot.lane.b32.xlu0 %v280, 1
    %v282 = vpop.permute.xlu0 %281
    %v283 = vsel %vm26, 0.0, %v282
    %284 = vrot.lane.b32.xlu0 %v280, 127
    %v285 = vpop.permute.xlu0 %284
    %v286 = vsel %vm27, 0.0, %v285
    %v288 = vsel %vm49, %v280, 0
    %290 = vmatprep.subr.mxu0 0.0
    %291 = vmatpush1.msra.mxu0 %v288
    %292 = vmatprep.subr.mxu0 0.0
    %293 = vmatpush1.msra.mxu0 0.0
    %294 = vmatprep.subr.mxu0 0.0
    %295 = vmatpush1.msra.mxu0 0.0
    %296 = vmatprep.subr.mxu0 0.0
    %297 = vmatpush1.msra.mxu0 0.0
    %298 = vmatprep.subr.mxu0 0.0
    %299 = vmatpush1.msra.mxu0 0.0
    %300 = vmatprep.subr.mxu0 0.0
    %301 = vmatpush1.msra.mxu0 0.0
    %302 = vmatprep.subr.mxu0 0.0
    %303 = vmatpush1.msra.mxu0 0.0
    %304 = vmatprep.subr.mxu0 0.0
    %305 = vmatpush1.msra.mxu0 0.0
    %306 = vmatprep.subr.mxu0 0.0
    %307 = vmatpush1.msra.mxu0 0.0
    %308 = vmatprep.subr.mxu0 0.0
    %309 = vmatpush1.msra.mxu0 0.0
    %310 = vmatprep.subr.mxu0 0.0
    %311 = vmatpush1.msra.mxu0 0.0
    %312 = vmatprep.subr.mxu0 0.0
    %313 = vmatpush1.msra.mxu0 0.0
    %314 = vmatprep.subr.mxu0 0.0
    %315 = vmatpush1.msra.mxu0 0.0
    %316 = vmatprep.subr.mxu0 0.0
    %317 = vmatpush1.msra.mxu0 0.0
    %318 = vmatprep.subr.mxu0 0.0
    %319 = vmatpush1.msra.mxu0 0.0
    %320 = vmatprep.subr.mxu0 0.0
    %321 = vmatpush1.msra.mxu0 0.0
    %322 = vmatprep.subr.mxu0 0.0
    %323 = vmatpush1.msra.mxu0 0.0
    %324 = vmatprep.subr.mxu0 0.0
    %325 = vmatpush1.msra.mxu0 0.0
    %326 = vmatprep.subr.mxu0 0.0
    %327 = vmatpush1.msra.mxu0 0.0
    %328 = vmatprep.subr.mxu0 0.0
    %329 = vmatpush1.msra.mxu0 0.0
    %330 = vmatprep.subr.mxu0 0.0
    %331 = vmatpush1.msra.mxu0 0.0
    %332 = vmatprep.subr.mxu0 0.0
    %333 = vmatpush1.msra.mxu0 0.0
    %334 = vmatprep.subr.mxu0 0.0
    %335 = vmatpush1.msra.mxu0 0.0
    %336 = vmatprep.subr.mxu0 0.0
    %337 = vmatpush1.msra.mxu0 0.0
    %338 = vmatprep.subr.mxu0 0.0
    %339 = vmatpush1.msra.mxu0 0.0
    %340 = vmatprep.subr.mxu0 0.0
    %341 = vmatpush1.msra.mxu0 0.0
    %342 = vmatprep.subr.mxu0 0.0
    %343 = vmatpush1.msra.mxu0 0.0
    %344 = vmatprep.subr.mxu0 0.0
    %345 = vmatpush1.msra.mxu0 0.0
    %346 = vmatprep.subr.mxu0 0.0
    %347 = vmatpush1.msra.mxu0 0.0
    %348 = vmatprep.subr.mxu0 0.0
    %349 = vmatpush1.msra.mxu0 0.0
    %350 = vmatprep.subr.mxu0 0.0
    %351 = vmatpush1.msra.mxu0 0.0
    %352 = vmatprep.subr.mxu0 0.0
    %353 = vmatpush1.msra.mxu0 0.0
    %354 = vmatprep.mubr.f32.mxu0 0.0
    %355 = vmatmul.mubr.f32.gmra.mrb[0].mxu0 %v47
    %v356 = vpop.f32.mrb[0].mxu0
    %v357 = vadd.f32 0.0, %v356
    %v358 = vpop.f32.mrb[0].mxu0
    %359 = vdwg.mxu0
    %v361 = vsel %vm49, %v283, 0
    %363 = vmatprep.subr.mxu0 0.0
    %364 = vmatpush1.msra.mxu0 %v361
    %365 = vmatprep.subr.mxu0 0.0
    %366 = vmatpush1.msra.mxu0 0.0
    %367 = vmatprep.subr.mxu0 0.0
    %368 = vmatpush1.msra.mxu0 0.0
    %369 = vmatprep.subr.mxu0 0.0
    %370 = vmatpush1.msra.mxu0 0.0
    %371 = vmatprep.subr.mxu0 0.0
    %372 = vmatpush1.msra.mxu0 0.0
    %373 = vmatprep.subr.mxu0 0.0
    %374 = vmatpush1.msra.mxu0 0.0
    %375 = vmatprep.subr.mxu0 0.0
    %376 = vmatpush1.msra.mxu0 0.0
    %377 = vmatprep.subr.mxu0 0.0
    %378 = vmatpush1.msra.mxu0 0.0
    %379 = vmatprep.subr.mxu0 0.0
    %380 = vmatpush1.msra.mxu0 0.0
    %381 = vmatprep.subr.mxu0 0.0
    %382 = vmatpush1.msra.mxu0 0.0
    %383 = vmatprep.subr.mxu0 0.0
    %384 = vmatpush1.msra.mxu0 0.0
    %385 = vmatprep.subr.mxu0 0.0
    %386 = vmatpush1.msra.mxu0 0.0
    %387 = vmatprep.subr.mxu0 0.0
    %388 = vmatpush1.msra.mxu0 0.0
    %389 = vmatprep.subr.mxu0 0.0
    %390 = vmatpush1.msra.mxu0 0.0
    %391 = vmatprep.subr.mxu0 0.0
    %392 = vmatpush1.msra.mxu0 0.0
    %393 = vmatprep.subr.mxu0 0.0
    %394 = vmatpush1.msra.mxu0 0.0
    %395 = vmatprep.subr.mxu0 0.0
    %396 = vmatpush1.msra.mxu0 0.0
    %397 = vmatprep.subr.mxu0 0.0
    %398 = vmatpush1.msra.mxu0 0.0
    %399 = vmatprep.subr.mxu0 0.0
    %400 = vmatpush1.msra.mxu0 0.0
    %401 = vmatprep.subr.mxu0 0.0
    %402 = vmatpush1.msra.mxu0 0.0
    %403 = vmatprep.subr.mxu0 0.0
    %404 = vmatpush1.msra.mxu0 0.0
    %405 = vmatprep.subr.mxu0 0.0
    %406 = vmatpush1.msra.mxu0 0.0
    %407 = vmatprep.subr.mxu0 0.0
    %408 = vmatpush1.msra.mxu0 0.0
    %409 = vmatprep.subr.mxu0 0.0
    %410 = vmatpush1.msra.mxu0 0.0
    %411 = vmatprep.subr.mxu0 0.0
    %412 = vmatpush1.msra.mxu0 0.0
    %413 = vmatprep.subr.mxu0 0.0
    %414 = vmatpush1.msra.mxu0 0.0
    %415 = vmatprep.subr.mxu0 0.0
    %416 = vmatpush1.msra.mxu0 0.0
    %417 = vmatprep.subr.mxu0 0.0
    %418 = vmatpush1.msra.mxu0 0.0
    %419 = vmatprep.subr.mxu0 0.0
    %420 = vmatpush1.msra.mxu0 0.0
    %421 = vmatprep.subr.mxu0 0.0
    %422 = vmatpush1.msra.mxu0 0.0
    %423 = vmatprep.subr.mxu0 0.0
    %424 = vmatpush1.msra.mxu0 0.0
    %425 = vmatprep.subr.mxu0 0.0
    %426 = vmatpush1.msra.mxu0 0.0
    %427 = vmatprep.mubr.f32.mxu0 0.0
    %428 = vmatmul.mubr.f32.gmra.mrb[0].mxu0 %v124
    %v429 = vpop.f32.mrb[0].mxu0
    %v430 = vadd.f32 %v357, %v429
    %v431 = vpop.f32.mrb[0].mxu0
    %432 = vdwg.mxu0
    %v434 = vsel %vm49, %v286, 0
    %436 = vmatprep.subr.mxu0 0.0
    %437 = vmatpush1.msra.mxu0 %v434
    %438 = vmatprep.subr.mxu0 0.0
    %439 = vmatpush1.msra.mxu0 0.0
    %440 = vmatprep.subr.mxu0 0.0
    %441 = vmatpush1.msra.mxu0 0.0
    %442 = vmatprep.subr.mxu0 0.0
    %443 = vmatpush1.msra.mxu0 0.0
    %444 = vmatprep.subr.mxu0 0.0
    %445 = vmatpush1.msra.mxu0 0.0
    %446 = vmatprep.subr.mxu0 0.0
    %447 = vmatpush1.msra.mxu0 0.0
    %448 = vmatprep.subr.mxu0 0.0
    %449 = vmatpush1.msra.mxu0 0.0
    %450 = vmatprep.subr.mxu0 0.0
    %451 = vmatpush1.msra.mxu0 0.0
    %452 = vmatprep.subr.mxu0 0.0
    %453 = vmatpush1.msra.mxu0 0.0
    %454 = vmatprep.subr.mxu0 0.0
    %455 = vmatpush1.msra.mxu0 0.0
    %456 = vmatprep.subr.mxu0 0.0
    %457 = vmatpush1.msra.mxu0 0.0
    %458 = vmatprep.subr.mxu0 0.0
    %459 = vmatpush1.msra.mxu0 0.0
    %460 = vmatprep.subr.mxu0 0.0
    %461 = vmatpush1.msra.mxu0 0.0
    %462 = vmatprep.subr.mxu0 0.0
    %463 = vmatpush1.msra.mxu0 0.0
    %464 = vmatprep.subr.mxu0 0.0
    %465 = vmatpush1.msra.mxu0 0.0
    %466 = vmatprep.subr.mxu0 0.0
    %467 = vmatpush1.msra.mxu0 0.0
    %468 = vmatprep.subr.mxu0 0.0
    %469 = vmatpush1.msra.mxu0 0.0
    %470 = vmatprep.subr.mxu0 0.0
    %471 = vmatpush1.msra.mxu0 0.0
    %472 = vmatprep.subr.mxu0 0.0
    %473 = vmatpush1.msra.mxu0 0.0
    %474 = vmatprep.subr.mxu0 0.0
    %475 = vmatpush1.msra.mxu0 0.0
    %476 = vmatprep.subr.mxu0 0.0
    %477 = vmatpush1.msra.mxu0 0.0
    %478 = vmatprep.subr.mxu0 0.0
    %479 = vmatpush1.msra.mxu0 0.0
    %480 = vmatprep.subr.mxu0 0.0
    %481 = vmatpush1.msra.mxu0 0.0
    %482 = vmatprep.subr.mxu0 0.0
    %483 = vmatpush1.msra.mxu0 0.0
    %484 = vmatprep.subr.mxu0 0.0
    %485 = vmatpush1.msra.mxu0 0.0
    %486 = vmatprep.subr.mxu0 0.0
    %487 = vmatpush1.msra.mxu0 0.0
    %488 = vmatprep.subr.mxu0 0.0
    %489 = vmatpush1.msra.mxu0 0.0
    %490 = vmatprep.subr.mxu0 0.0
    %491 = vmatpush1.msra.mxu0 0.0
    %492 = vmatprep.subr.mxu0 0.0
    %493 = vmatpush1.msra.mxu0 0.0
    %494 = vmatprep.subr.mxu0 0.0
    %495 = vmatpush1.msra.mxu0 0.0
    %496 = vmatprep.subr.mxu0 0.0
    %497 = vmatpush1.msra.mxu0 0.0
    %498 = vmatprep.subr.mxu0 0.0
    %499 = vmatpush1.msra.mxu0 0.0
    %500 = vmatprep.mubr.f32.mxu0 0.0
    %501 = vmatmul.mubr.f32.gmra.mrb[0].mxu0 %v200
    %v502 = vpop.f32.mrb[0].mxu0
    %v503 = vadd.f32 0.0, %v502
    %v504 = vpop.f32.mrb[0].mxu0
    %505 = vdwg.mxu0
    %v506 = vadd.f32 %v430, %v503
    %507 = vadd.xlane.f32.xlu0 %v506
    %v508 = vpop.xlane.xlu0 %507
    %v509 = vadd.f32 %v278, %v508
    %v510 = vrcp.pop 256.0
    %v511 = vmul.f32 %v509, %v510
    %v512 = vsub.f32 %v275, %v511
    %v513 = vmul.f32 %v512, %v512
    %514 = vadd.xlane.f32.xlu0 %v513
    %v515 = vpop.xlane.xlu0 %514
    %v516 = vadd.f32 %v515, 0.0
    %v517 = vsub.f32 %v506, %v511
    %v518 = vmul.f32 %v517, %v517
    %519 = vadd.xlane.f32.xlu0 %v518
    %v520 = vpop.xlane.xlu0 %519
    %v521 = vadd.f32 %v516, %v520
    %v522 = vmul.f32 %v521, %v510
    %v523 = vld [vmem:[%s3] sm:$0xff]
    %v524 = vadd.f32 %v522, 1e-05
    %v525 = vrsqrt.pop %v524
    %v526 = vmul.f32 %v523, %v525
    %v527 = vld [vmem:[%s4] sm:$0xff]
    %v528 = vmul.f32 %v511, %v526
    %v529 = vsub.f32 %v527, %v528
    %531 = vset.pattern.permute.xlu0 0
    %532 = vperm.xlu0 %531, %v526
    %v533 = vpop.permute.xlu0 %532
    %v535 = vmul.f32 %v275, %v533
    %537 = vset.pattern.permute.xlu0 0
    %538 = vperm.xlu0 %537, %v529
    %v539 = vpop.permute.xlu0 %538
    %v541 = vadd.f32 %v535, %v539
    %vm542 = vcmp.gt.f32.partialorder %v541, 0.0
    %v543 = vmul.f32 %v541, 0.01
    %v544 = vsel %vm542, %v541, %v543
    %545 = vrot.lane.b32.xlu0 %v544, 1
    %v546 = vpop.permute.xlu0 %545
    %v547 = vsel %vm26, 0.0, %v546
    %548 = vrot.lane.b32.xlu0 %v544, 127
    %v549 = vpop.permute.xlu0 %548
    %v550 = vsel %vm27, 0.0, %v549
    %vm551 = vcmask 64512
    %v553 = vsel %vm551, %v35, 0
    %555 = vmatprep.subr.mxu0 0.0
    %556 = vmatpush1.msra.mxu0 %v544
    %557 = vmatprep.subr.mxu0 0.0
    %558 = vmatpush1.msra.mxu0 0.0
    %559 = vmatprep.subr.mxu0 0.0
    %560 = vmatpush1.msra.mxu0 0.0
    %561 = vmatprep.subr.mxu0 0.0
    %562 = vmatpush1.msra.mxu0 0.0
    %563 = vmatprep.subr.mxu0 0.0
    %564 = vmatpush1.msra.mxu0 0.0
    %565 = vmatprep.subr.mxu0 0.0
    %566 = vmatpush1.msra.mxu0 0.0
    %567 = vmatprep.subr.mxu0 0.0
    %568 = vmatpush1.msra.mxu0 0.0
    %569 = vmatprep.subr.mxu0 0.0
    %570 = vmatpush1.msra.mxu0 0.0
    %571 = vmatprep.subr.mxu0 0.0
    %572 = vmatpush1.msra.mxu0 0.0
    %573 = vmatprep.subr.mxu0 0.0
    %574 = vmatpush1.msra.mxu0 0.0
    %575 = vmatprep.subr.mxu0 0.0
    %576 = vmatpush1.msra.mxu0 0.0
    %577 = vmatprep.subr.mxu0 0.0
    %578 = vmatpush1.msra.mxu0 0.0
    %579 = vmatprep.subr.mxu0 0.0
    %580 = vmatpush1.msra.mxu0 0.0
    %581 = vmatprep.subr.mxu0 0.0
    %582 = vmatpush1.msra.mxu0 0.0
    %583 = vmatprep.subr.mxu0 0.0
    %584 = vmatpush1.msra.mxu0 0.0
    %585 = vmatprep.subr.mxu0 0.0
    %586 = vmatpush1.msra.mxu0 0.0
    %587 = vmatprep.subr.mxu0 0.0
    %588 = vmatpush1.msra.mxu0 0.0
    %589 = vmatprep.subr.mxu0 0.0
    %590 = vmatpush1.msra.mxu0 0.0
    %591 = vmatprep.subr.mxu0 0.0
    %592 = vmatpush1.msra.mxu0 0.0
    %593 = vmatprep.subr.mxu0 0.0
    %594 = vmatpush1.msra.mxu0 0.0
    %595 = vmatprep.subr.mxu0 0.0
    %596 = vmatpush1.msra.mxu0 0.0
    %597 = vmatprep.subr.mxu0 0.0
    %598 = vmatpush1.msra.mxu0 0.0
    %599 = vmatprep.subr.mxu0 0.0
    %600 = vmatpush1.msra.mxu0 0.0
    %601 = vmatprep.subr.mxu0 0.0
    %602 = vmatpush1.msra.mxu0 0.0
    %603 = vmatprep.subr.mxu0 0.0
    %604 = vmatpush1.msra.mxu0 0.0
    %605 = vmatprep.subr.mxu0 0.0
    %606 = vmatpush1.msra.mxu0 0.0
    %607 = vmatprep.subr.mxu0 0.0
    %608 = vmatpush1.msra.mxu0 0.0
    %609 = vmatprep.subr.mxu0 0.0
    %610 = vmatpush1.msra.mxu0 0.0
    %611 = vmatprep.subr.mxu0 0.0
    %612 = vmatpush1.msra.mxu0 0.0
    %613 = vmatprep.subr.mxu0 0.0
    %614 = vmatpush1.msra.mxu0 0.0
    %615 = vmatprep.subr.mxu0 0.0
    %616 = vmatpush1.msra.mxu0 0.0
    %617 = vmatprep.subr.mxu0 0.0
    %618 = vmatpush1.msra.mxu0 0.0
    %619 = vmatprep.mubr.f32.mxu0 0.0
    %620 = vmatmul.mubr.f32.gmra.mrb[0].mxu0 %v553
    %v621 = vpop.f32.mrb[0].mxu0
    %v622 = vadd.f32 0.0, %v621
    %v623 = vpop.f32.mrb[0].mxu0
    %624 = vdwg.mxu0
    %v626 = vsel %vm551, %v33, 0
    %628 = vmatprep.subr.mxu0 0.0
    %629 = vmatpush1.msra.mxu0 %v547
    %630 = vmatprep.subr.mxu0 0.0
    %631 = vmatpush1.msra.mxu0 0.0
    %632 = vmatprep.subr.mxu0 0.0
    %633 = vmatpush1.msra.mxu0 0.0
    %634 = vmatprep.subr.mxu0 0.0
    %635 = vmatpush1.msra.mxu0 0.0
    %636 = vmatprep.subr.mxu0 0.0
    %637 = vmatpush1.msra.mxu0 0.0
    %638 = vmatprep.subr.mxu0 0.0
    %639 = vmatpush1.msra.mxu0 0.0
    %640 = vmatprep.subr.mxu0 0.0
    %641 = vmatpush1.msra.mxu0 0.0
    %642 = vmatprep.subr.mxu0 0.0
    %643 = vmatpush1.msra.mxu0 0.0
    %644 = vmatprep.subr.mxu0 0.0
    %645 = vmatpush1.msra.mxu0 0.0
    %646 = vmatprep.subr.mxu0 0.0
    %647 = vmatpush1.msra.mxu0 0.0
    %648 = vmatprep.subr.mxu0 0.0
    %649 = vmatpush1.msra.mxu0 0.0
    %650 = vmatprep.subr.mxu0 0.0
    %651 = vmatpush1.msra.mxu0 0.0
    %652 = vmatprep.subr.mxu0 0.0
    %653 = vmatpush1.msra.mxu0 0.0
    %654 = vmatprep.subr.mxu0 0.0
    %655 = vmatpush1.msra.mxu0 0.0
    %656 = vmatprep.subr.mxu0 0.0
    %657 = vmatpush1.msra.mxu0 0.0
    %658 = vmatprep.subr.mxu0 0.0
    %659 = vmatpush1.msra.mxu0 0.0
    %660 = vmatprep.subr.mxu0 0.0
    %661 = vmatpush1.msra.mxu0 0.0
    %662 = vmatprep.subr.mxu0 0.0
    %663 = vmatpush1.msra.mxu0 0.0
    %664 = vmatprep.subr.mxu0 0.0
    %665 = vmatpush1.msra.mxu0 0.0
    %666 = vmatprep.subr.mxu0 0.0
    %667 = vmatpush1.msra.mxu0 0.0
    %668 = vmatprep.subr.mxu0 0.0
    %669 = vmatpush1.msra.mxu0 0.0
    %670 = vmatprep.subr.mxu0 0.0
    %671 = vmatpush1.msra.mxu0 0.0
    %672 = vmatprep.subr.mxu0 0.0
    %673 = vmatpush1.msra.mxu0 0.0
    %674 = vmatprep.subr.mxu0 0.0
    %675 = vmatpush1.msra.mxu0 0.0
    %676 = vmatprep.subr.mxu0 0.0
    %677 = vmatpush1.msra.mxu0 0.0
    %678 = vmatprep.subr.mxu0 0.0
    %679 = vmatpush1.msra.mxu0 0.0
    %680 = vmatprep.subr.mxu0 0.0
    %681 = vmatpush1.msra.mxu0 0.0
    %682 = vmatprep.subr.mxu0 0.0
    %683 = vmatpush1.msra.mxu0 0.0
    %684 = vmatprep.subr.mxu0 0.0
    %685 = vmatpush1.msra.mxu0 0.0
    %686 = vmatprep.subr.mxu0 0.0
    %687 = vmatpush1.msra.mxu0 0.0
    %688 = vmatprep.subr.mxu0 0.0
    %689 = vmatpush1.msra.mxu0 0.0
    %690 = vmatprep.subr.mxu0 0.0
    %691 = vmatpush1.msra.mxu0 0.0
    %692 = vmatprep.mubr.f32.mxu0 0.0
    %693 = vmatmul.mubr.f32.gmra.mrb[0].mxu0 %v626
    %v694 = vpop.f32.mrb[0].mxu0
    %v695 = vadd.f32 %v622, %v694
    %v696 = vpop.f32.mrb[0].mxu0
    %697 = vdwg.mxu0
    %v699 = vsel %vm551, %v37, 0
    %701 = vmatprep.subr.mxu0 0.0
    %702 = vmatpush1.msra.mxu0 %v550
    %703 = vmatprep.subr.mxu0 0.0
    %704 = vmatpush1.msra.mxu0 0.0
    %705 = vmatprep.subr.mxu0 0.0
    %706 = vmatpush1.msra.mxu0 0.0
    %707 = vmatprep.subr.mxu0 0.0
    %708 = vmatpush1.msra.mxu0 0.0
    %709 = vmatprep.subr.mxu0 0.0
    %710 = vmatpush1.msra.mxu0 0.0
    %711 = vmatprep.subr.mxu0 0.0
    %712 = vmatpush1.msra.mxu0 0.0
    %713 = vmatprep.subr.mxu0 0.0
    %714 = vmatpush1.msra.mxu0 0.0
    %715 = vmatprep.subr.mxu0 0.0
    %716 = vmatpush1.msra.mxu0 0.0
    %717 = vmatprep.subr.mxu0 0.0
    %718 = vmatpush1.msra.mxu0 0.0
    %719 = vmatprep.subr.mxu0 0.0
    %720 = vmatpush1.msra.mxu0 0.0
    %721 = vmatprep.subr.mxu0 0.0
    %722 = vmatpush1.msra.mxu0 0.0
    %723 = vmatprep.subr.mxu0 0.0
    %724 = vmatpush1.msra.mxu0 0.0
    %725 = vmatprep.subr.mxu0 0.0
    %726 = vmatpush1.msra.mxu0 0.0
    %727 = vmatprep.subr.mxu0 0.0
    %728 = vmatpush1.msra.mxu0 0.0
    %729 = vmatprep.subr.mxu0 0.0
    %730 = vmatpush1.msra.mxu0 0.0
    %731 = vmatprep.subr.mxu0 0.0
    %732 = vmatpush1.msra.mxu0 0.0
    %733 = vmatprep.subr.mxu0 0.0
    %734 = vmatpush1.msra.mxu0 0.0
    %735 = vmatprep.subr.mxu0 0.0
    %736 = vmatpush1.msra.mxu0 0.0
    %737 = vmatprep.subr.mxu0 0.0
    %738 = vmatpush1.msra.mxu0 0.0
    %739 = vmatprep.subr.mxu0 0.0
    %740 = vmatpush1.msra.mxu0 0.0
    %741 = vmatprep.subr.mxu0 0.0
    %742 = vmatpush1.msra.mxu0 0.0
    %743 = vmatprep.subr.mxu0 0.0
    %744 = vmatpush1.msra.mxu0 0.0
    %745 = vmatprep.subr.mxu0 0.0
    %746 = vmatpush1.msra.mxu0 0.0
    %747 = vmatprep.subr.mxu0 0.0
    %748 = vmatpush1.msra.mxu0 0.0
    %749 = vmatprep.subr.mxu0 0.0
    %750 = vmatpush1.msra.mxu0 0.0
    %751 = vmatprep.subr.mxu0 0.0
    %752 = vmatpush1.msra.mxu0 0.0
    %753 = vmatprep.subr.mxu0 0.0
    %754 = vmatpush1.msra.mxu0 0.0
    %755 = vmatprep.subr.mxu0 0.0
    %756 = vmatpush1.msra.mxu0 0.0
    %757 = vmatprep.subr.mxu0 0.0
    %758 = vmatpush1.msra.mxu0 0.0
    %759 = vmatprep.subr.mxu0 0.0
    %760 = vmatpush1.msra.mxu0 0.0
    %761 = vmatprep.subr.mxu0 0.0
    %762 = vmatpush1.msra.mxu0 0.0
    %763 = vmatprep.subr.mxu0 0.0
    %764 = vmatpush1.msra.mxu0 0.0
    %765 = vmatprep.mubr.f32.mxu0 0.0
    %766 = vmatmul.mubr.f32.gmra.mrb[0].mxu0 %v699
    %v767 = vpop.f32.mrb[0].mxu0
    %v768 = vadd.f32 0.0, %v767
    %v769 = vpop.f32.mrb[0].mxu0
    %770 = vdwg.mxu0
    %v771 = vadd.f32 %v695, %v768
    %v772 = vld [vmem:[%s5] sm:$0xf]
    %774 = vset.pattern.permute.xlu0 0
    %775 = vperm.xlu0 %774, %v772
    %v776 = vpop.permute.xlu0 %775
    %v778 = vadd.f32 %v771, %v776
    %v779 = vadd.f32 %v38, %v778
    %780 = vst [vmem:[#allocation2] sm:$0xf] %v779
    %v781 = vmul.f32 %v506, %v533
    %v782 = vadd.f32 %v781, %v539
    %vm783 = vcmp.gt.f32.partialorder %v782, 0.0
    %v784 = vmul.f32 %v782, 0.01
    %v785 = vsel %vm783, %v782, %v784
    %786 = vrot.lane.b32.xlu0 %v785, 1
    %v787 = vpop.permute.xlu0 %786
    %v788 = vsel %vm26, 0.0, %v787
    %789 = vrot.lane.b32.xlu0 %v785, 127
    %v790 = vpop.permute.xlu0 %789
    %v791 = vsel %vm27, 0.0, %v790
    %792 = vmatprep.subr.mxu0 0.0
    %793 = vmatpush1.msra.mxu0 %v785
    %794 = vmatprep.subr.mxu0 0.0
    %795 = vmatpush1.msra.mxu0 0.0
    %796 = vmatprep.subr.mxu0 0.0
    %797 = vmatpush1.msra.mxu0 0.0
    %798 = vmatprep.subr.mxu0 0.0
    %799 = vmatpush1.msra.mxu0 0.0
    %800 = vmatprep.subr.mxu0 0.0
    %801 = vmatpush1.msra.mxu0 0.0
    %802 = vmatprep.subr.mxu0 0.0
    %803 = vmatpush1.msra.mxu0 0.0
    %804 = vmatprep.subr.mxu0 0.0
    %805 = vmatpush1.msra.mxu0 0.0
    %806 = vmatprep.subr.mxu0 0.0
    %807 = vmatpush1.msra.mxu0 0.0
    %808 = vmatprep.subr.mxu0 0.0
    %809 = vmatpush1.msra.mxu0 0.0
    %810 = vmatprep.subr.mxu0 0.0
    %811 = vmatpush1.msra.mxu0 0.0
    %812 = vmatprep.subr.mxu0 0.0
    %813 = vmatpush1.msra.mxu0 0.0
    %814 = vmatprep.subr.mxu0 0.0
    %815 = vmatpush1.msra.mxu0 0.0
    %816 = vmatprep.subr.mxu0 0.0
    %817 = vmatpush1.msra.mxu0 0.0
    %818 = vmatprep.subr.mxu0 0.0
    %819 = vmatpush1.msra.mxu0 0.0
    %820 = vmatprep.subr.mxu0 0.0
    %821 = vmatpush1.msra.mxu0 0.0
    %822 = vmatprep.subr.mxu0 0.0
    %823 = vmatpush1.msra.mxu0 0.0
    %824 = vmatprep.subr.mxu0 0.0
    %825 = vmatpush1.msra.mxu0 0.0
    %826 = vmatprep.subr.mxu0 0.0
    %827 = vmatpush1.msra.mxu0 0.0
    %828 = vmatprep.subr.mxu0 0.0
    %829 = vmatpush1.msra.mxu0 0.0
    %830 = vmatprep.subr.mxu0 0.0
    %831 = vmatpush1.msra.mxu0 0.0
    %832 = vmatprep.subr.mxu0 0.0
    %833 = vmatpush1.msra.mxu0 0.0
    %834 = vmatprep.subr.mxu0 0.0
    %835 = vmatpush1.msra.mxu0 0.0
    %836 = vmatprep.subr.mxu0 0.0
    %837 = vmatpush1.msra.mxu0 0.0
    %838 = vmatprep.subr.mxu0 0.0
    %839 = vmatpush1.msra.mxu0 0.0
    %840 = vmatprep.subr.mxu0 0.0
    %841 = vmatpush1.msra.mxu0 0.0
    %842 = vmatprep.subr.mxu0 0.0
    %843 = vmatpush1.msra.mxu0 0.0
    %844 = vmatprep.subr.mxu0 0.0
    %845 = vmatpush1.msra.mxu0 0.0
    %846 = vmatprep.subr.mxu0 0.0
    %847 = vmatpush1.msra.mxu0 0.0
    %848 = vmatprep.subr.mxu0 0.0
    %849 = vmatpush1.msra.mxu0 0.0
    %850 = vmatprep.subr.mxu0 0.0
    %851 = vmatpush1.msra.mxu0 0.0
    %852 = vmatprep.subr.mxu0 0.0
    %853 = vmatpush1.msra.mxu0 0.0
    %854 = vmatprep.subr.mxu0 0.0
    %855 = vmatpush1.msra.mxu0 0.0
    %856 = vmatprep.mubr.f32.mxu0 0.0
    %857 = vmatmul.mubr.f32.gmra.mrb[0].mxu0 %v553
    %v858 = vpop.f32.mrb[0].mxu0
    %v859 = vadd.f32 0.0, %v858
    %v860 = vpop.f32.mrb[0].mxu0
    %861 = vdwg.mxu0
    %862 = vmatprep.subr.mxu0 0.0
    %863 = vmatpush1.msra.mxu0 %v788
    %864 = vmatprep.subr.mxu0 0.0
    %865 = vmatpush1.msra.mxu0 0.0
    %866 = vmatprep.subr.mxu0 0.0
    %867 = vmatpush1.msra.mxu0 0.0
    %868 = vmatprep.subr.mxu0 0.0
    %869 = vmatpush1.msra.mxu0 0.0
    %870 = vmatprep.subr.mxu0 0.0
    %871 = vmatpush1.msra.mxu0 0.0
    %872 = vmatprep.subr.mxu0 0.0
    %873 = vmatpush1.msra.mxu0 0.0
    %874 = vmatprep.subr.mxu0 0.0
    %875 = vmatpush1.msra.mxu0 0.0
    %876 = vmatprep.subr.mxu0 0.0
    %877 = vmatpush1.msra.mxu0 0.0
    %878 = vmatprep.subr.mxu0 0.0
    %879 = vmatpush1.msra.mxu0 0.0
    %880 = vmatprep.subr.mxu0 0.0
    %881 = vmatpush1.msra.mxu0 0.0
    %882 = vmatprep.subr.mxu0 0.0
    %883 = vmatpush1.msra.mxu0 0.0
    %884 = vmatprep.subr.mxu0 0.0
    %885 = vmatpush1.msra.mxu0 0.0
    %886 = vmatprep.subr.mxu0 0.0
    %887 = vmatpush1.msra.mxu0 0.0
    %888 = vmatprep.subr.mxu0 0.0
    %889 = vmatpush1.msra.mxu0 0.0
    %890 = vmatprep.subr.mxu0 0.0
    %891 = vmatpush1.msra.mxu0 0.0
    %892 = vmatprep.subr.mxu0 0.0
    %893 = vmatpush1.msra.mxu0 0.0
    %894 = vmatprep.subr.mxu0 0.0
    %895 = vmatpush1.msra.mxu0 0.0
    %896 = vmatprep.subr.mxu0 0.0
    %897 = vmatpush1.msra.mxu0 0.0
    %898 = vmatprep.subr.mxu0 0.0
    %899 = vmatpush1.msra.mxu0 0.0
    %900 = vmatprep.subr.mxu0 0.0
    %901 = vmatpush1.msra.mxu0 0.0
    %902 = vmatprep.subr.mxu0 0.0
    %903 = vmatpush1.msra.mxu0 0.0
    %904 = vmatprep.subr.mxu0 0.0
    %905 = vmatpush1.msra.mxu0 0.0
    %906 = vmatprep.subr.mxu0 0.0
    %907 = vmatpush1.msra.mxu0 0.0
    %908 = vmatprep.subr.mxu0 0.0
    %909 = vmatpush1.msra.mxu0 0.0
    %910 = vmatprep.subr.mxu0 0.0
    %911 = vmatpush1.msra.mxu0 0.0
    %912 = vmatprep.subr.mxu0 0.0
    %913 = vmatpush1.msra.mxu0 0.0
    %914 = vmatprep.subr.mxu0 0.0
    %915 = vmatpush1.msra.mxu0 0.0
    %916 = vmatprep.subr.mxu0 0.0
    %917 = vmatpush1.msra.mxu0 0.0
    %918 = vmatprep.subr.mxu0 0.0
    %919 = vmatpush1.msra.mxu0 0.0
    %920 = vmatprep.subr.mxu0 0.0
    %921 = vmatpush1.msra.mxu0 0.0
    %922 = vmatprep.subr.mxu0 0.0
    %923 = vmatpush1.msra.mxu0 0.0
    %924 = vmatprep.subr.mxu0 0.0
    %925 = vmatpush1.msra.mxu0 0.0
    %926 = vmatprep.mubr.f32.mxu0 0.0
    %927 = vmatmul.mubr.f32.gmra.mrb[0].mxu0 %v626
    %v928 = vpop.f32.mrb[0].mxu0
    %v929 = vadd.f32 %v859, %v928
    %v930 = vpop.f32.mrb[0].mxu0
    %931 = vdwg.mxu0
    %932 = vmatprep.subr.mxu0 0.0
    %933 = vmatpush1.msra.mxu0 %v791
    %934 = vmatprep.subr.mxu0 0.0
    %935 = vmatpush1.msra.mxu0 0.0
    %936 = vmatprep.subr.mxu0 0.0
    %937 = vmatpush1.msra.mxu0 0.0
    %938 = vmatprep.subr.mxu0 0.0
    %939 = vmatpush1.msra.mxu0 0.0
    %940 = vmatprep.subr.mxu0 0.0
    %941 = vmatpush1.msra.mxu0 0.0
    %942 = vmatprep.subr.mxu0 0.0
    %943 = vmatpush1.msra.mxu0 0.0
    %944 = vmatprep.subr.mxu0 0.0
    %945 = vmatpush1.msra.mxu0 0.0
    %946 = vmatprep.subr.mxu0 0.0
    %947 = vmatpush1.msra.mxu0 0.0
    %948 = vmatprep.subr.mxu0 0.0
    %949 = vmatpush1.msra.mxu0 0.0
    %950 = vmatprep.subr.mxu0 0.0
    %951 = vmatpush1.msra.mxu0 0.0
    %952 = vmatprep.subr.mxu0 0.0
    %953 = vmatpush1.msra.mxu0 0.0
    %954 = vmatprep.subr.mxu0 0.0
    %955 = vmatpush1.msra.mxu0 0.0
    %956 = vmatprep.subr.mxu0 0.0
    %957 = vmatpush1.msra.mxu0 0.0
    %958 = vmatprep.subr.mxu0 0.0
    %959 = vmatpush1.msra.mxu0 0.0
    %960 = vmatprep.subr.mxu0 0.0
    %961 = vmatpush1.msra.mxu0 0.0
    %962 = vmatprep.subr.mxu0 0.0
    %963 = vmatpush1.msra.mxu0 0.0
    %964 = vmatprep.subr.mxu0 0.0
    %965 = vmatpush1.msra.mxu0 0.0
    %966 = vmatprep.subr.mxu0 0.0
    %967 = vmatpush1.msra.mxu0 0.0
    %968 = vmatprep.subr.mxu0 0.0
    %969 = vmatpush1.msra.mxu0 0.0
    %970 = vmatprep.subr.mxu0 0.0
    %971 = vmatpush1.msra.mxu0 0.0
    %972 = vmatprep.subr.mxu0 0.0
    %973 = vmatpush1.msra.mxu0 0.0
    %974 = vmatprep.subr.mxu0 0.0
    %975 = vmatpush1.msra.mxu0 0.0
    %976 = vmatprep.subr.mxu0 0.0
    %977 = vmatpush1.msra.mxu0 0.0
    %978 = vmatprep.subr.mxu0 0.0
    %979 = vmatpush1.msra.mxu0 0.0
    %980 = vmatprep.subr.mxu0 0.0
    %981 = vmatpush1.msra.mxu0 0.0
    %982 = vmatprep.subr.mxu0 0.0
    %983 = vmatpush1.msra.mxu0 0.0
    %984 = vmatprep.subr.mxu0 0.0
    %985 = vmatpush1.msra.mxu0 0.0
    %986 = vmatprep.subr.mxu0 0.0
    %987 = vmatpush1.msra.mxu0 0.0
    %988 = vmatprep.subr.mxu0 0.0
    %989 = vmatpush1.msra.mxu0 0.0
    %990 = vmatprep.subr.mxu0 0.0
    %991 = vmatpush1.msra.mxu0 0.0
    %992 = vmatprep.subr.mxu0 0.0
    %993 = vmatpush1.msra.mxu0 0.0
    %994 = vmatprep.subr.mxu0 0.0
    %995 = vmatpush1.msra.mxu0 0.0
    %996 = vmatprep.mubr.f32.mxu0 0.0
    %997 = vmatmul.mubr.f32.gmra.mrb[0].mxu0 %v699
    %v998 = vpop.f32.mrb[0].mxu0
    %v999 = vadd.f32 0.0, %v998
    %v1000 = vpop.f32.mrb[0].mxu0
    %1001 = vdwg.mxu0
    %v1002 = vadd.f32 %v929, %v999
    %v1003 = vld [vmem:[%s5] sm:$0xf]
    %1005 = vset.pattern.permute.xlu0 0
    %1006 = vperm.xlu0 %1005, %v1003
    %v1007 = vpop.permute.xlu0 %1006
    %v1009 = vadd.f32 %v1002, %v1007
    %v1010 = vld [vmem:[%s279] sm:$0xf]
    %v1011 = vadd.f32 %v1010, %v1009
    %s1012 = scalar_lea.vmem [#allocation2], 4
    %1013 = vst [vmem:[%s1012] sm:$0xf] %v1011
    // Predicated region
    $region26: #{encoder_conv_block.1} parent=1 // pred_check
      _
    $region27: #{encoder_conv_block.1} parent=1 // pred_check_branch
      %1015 = sbr.rel (0) target = $region29
    $region28: #{encoder_conv_block.1} parent=1 // pred_region
      %s1017 = ssub.s32 128, 128
      %1018 = vsyncadd [#allocation3], %s1017
      %s1019 = sshll.u32 [#allocation2], 4
      %s1020 = int_to_ptr.vmem [resolvable:$true] %s1019
      %1025 = dma.vmem_to_hbm [thread:$0]  %s1020, 128, %s6, [#allocation3], 64, 64, 4
    $region29: #{encoder_conv_block.1} parent=1 // pred_fallthru
      _
    // Predicated region
    $region30: #{encoder_conv_block.1} parent=1 // pred_check
      _
    $region31: #{encoder_conv_block.1} parent=1 // pred_check_branch
      %1027 = sbr.rel (0) target = $region33
    $region32: #{encoder_conv_block.1} parent=1 // pred_region
      %1028 = dma.done [#allocation3], 128
    $region33: #{encoder_conv_block.1} parent=1 // pred_fallthru
      _
    %1029 = vsyncpa [#allocation3], 1

</llo_original>
